<compile_context>
chip_gen: v5e
topology: v5e:2x2
jax: 0.10.0
libtpu: 0.0.40
codegen_flags: <defaults>
</compile_context>

<pallas_src>
import functools

import jax
import jax.numpy as jnp
from jax.experimental import pallas as pl
from jax.experimental.pallas import tpu as pltpu


def _round_up(x, m):
    return ((x + m - 1) // m) * m


def _fused_mlp_kernel(*refs, n_layers, compute_dtype, with_feats):
    """refs = (x, w1, b1, ..., wL, bL, logits[, feats]).

    Hidden layers are Linear + ReLU; the last is the classifier Linear.
    Matmul operands are `compute_dtype` (bf16 or f32), accumulation is f32,
    bias-add / ReLU run in f32.
    """
    x_ref = refs[0]
    if with_feats:
        logits_ref, feats_ref = refs[-2], refs[-1]
        param_refs = refs[1:-2]
    else:
        logits_ref = refs[-1]
        param_refs = refs[1:-1]

    h = x_ref[...]                       # already compute_dtype; no f32 up-cast

    if with_feats and n_layers == 1:
        # No hidden layers: features == flattened input.
        feats_ref[...] = h.astype(feats_ref.dtype)

    for li in range(n_layers):
        w = param_refs[2 * li][...]
        b = param_refs[2 * li + 1][...]
        y = jnp.dot(h.astype(compute_dtype), w.astype(compute_dtype),
                    preferred_element_type=jnp.float32)
        y = y + b.astype(jnp.float32)    # (1, N) broadcasts over rows
        if li < n_layers - 1:
            h_f32 = jnp.maximum(y, 0.0)
            if with_feats and li == n_layers - 2:
                feats_ref[...] = h_f32.astype(feats_ref.dtype)
            h = h_f32.astype(compute_dtype)
        else:
            logits_ref[...] = y.astype(logits_ref.dtype)


def prepare_mlp_params(params, compute_dtype=jnp.bfloat16):
    """One-time parameter prep (do NOT call per forward).

    Transposes each weight to (in, out), zero-pads both dims to multiples of
    128 lanes, and casts weights to `compute_dtype`.  Biases stay f32.
    Zero padding is exact: padded output lanes stay 0 through bias/ReLU and
    padded contraction rows multiply zero activations.
    """
    layers, dims = [], []
    for (w, b) in params:
        out_d, in_d = w.shape
        Np = _round_up(out_d, 128)
        Kp = _round_up(in_d, 128)
        wt = jnp.zeros((Kp, Np), jnp.float32).at[:in_d, :out_d].set(w.T)
        wt = wt.astype(compute_dtype)
        bp = jnp.zeros((1, Np), jnp.float32).at[:, :out_d].set(b.reshape(1, -1))
        layers.append((wt, bp))
        dims.append((in_d, out_d))
    return dict(layers=tuple(layers), dims=tuple(dims),
                compute_dtype=compute_dtype)


def mlp_forward(x, prepped, only_logits=True, batch_tile=256,
                vmem_limit_bytes=32 * 1024 * 1024):
    """Mirrors MLP.forward: x.view(B, -1) -> Linear+ReLU stack -> classifier."""
    layers = prepped["layers"]
    dims = prepped["dims"]
    compute_dtype = prepped["compute_dtype"]
    n_layers = len(layers)
    with_feats = not only_logits

    in_d0 = dims[0][0]
    feat_in = dims[-1][0]                 # width of z (last hidden / input)
    n_class = dims[-1][1]

    B = x.shape[0]
    xf = x.reshape(B, -1)                 # x.view(x.size(0), -1)
    K = xf.shape[1]
    assert K == in_d0, f"flattened input width {K} != expected {in_d0}"

    Kp = layers[0][0].shape[0]
    Cp = layers[-1][0].shape[1]
    Fp = _round_up(feat_in, 128)

    # bf16 packs 16 sublanes / vreg; f32 packs 8.
    sub = 16 if compute_dtype == jnp.bfloat16 else 8
    Bp = max(_round_up(B, sub), sub)
    use_grid = Bp >= 2 * batch_tile
    if use_grid:
        Bp = _round_up(Bp, batch_tile)
        grid_m = Bp // batch_tile
    else:
        grid_m = 1

    xp = jnp.pad(xf.astype(compute_dtype), ((0, Bp - B), (0, Kp - K)))

    inputs = [xp]
    flops = 0
    for (wt, bp) in layers:
        inputs += [wt, bp]
        flops += 2 * Bp * wt.shape[0] * wt.shape[1]

    bytes_accessed = sum(int(a.size) * a.dtype.itemsize for a in inputs)
    bytes_accessed += Bp * Cp * 4 + (Bp * Fp * 4 if with_feats else 0)

    kernel = functools.partial(_fused_mlp_kernel, n_layers=n_layers,
                               compute_dtype=compute_dtype,
                               with_feats=with_feats)

    if with_feats:
        out_shape = (jax.ShapeDtypeStruct((Bp, Cp), jnp.float32),
                     jax.ShapeDtypeStruct((Bp, Fp), jnp.float32))
    else:
        out_shape = jax.ShapeDtypeStruct((Bp, Cp), jnp.float32)

    if use_grid:
        # Batch-parallel grid: x / outputs tiled over rows, weights resident
        # (constant index_map).  "parallel" lets v7x shard rows across its 2 TCs.
        in_specs = [pl.BlockSpec((batch_tile, Kp), lambda i: (i, 0))]
        for (wt, bp) in layers:
            in_specs.append(pl.BlockSpec(wt.shape, lambda i: (0, 0)))
            in_specs.append(pl.BlockSpec(bp.shape, lambda i: (0, 0)))
        logits_spec = pl.BlockSpec((batch_tile, Cp), lambda i: (i, 0))
        feats_spec = pl.BlockSpec((batch_tile, Fp), lambda i: (i, 0))
        out_specs = (logits_spec, feats_spec) if with_feats else logits_spec
        grid_kwargs = dict(grid=(grid_m,))
        compiler_params = pltpu.CompilerParams(
            dimension_semantics=("parallel",),
            vmem_limit_bytes=vmem_limit_bytes)
    else:
        # No grid: single invocation, whole arrays resident in VMEM with a
        # single buffer each (no pointless double-buffering).
        vmem_spec = pl.BlockSpec(memory_space=pltpu.MemorySpace.VMEM)
        in_specs = [vmem_spec] * len(inputs)
        out_specs = (vmem_spec, vmem_spec) if with_feats else vmem_spec
        grid_kwargs = {}
        compiler_params = pltpu.CompilerParams(
            vmem_limit_bytes=vmem_limit_bytes)

    result = pl.pallas_call(
        kernel,
        out_shape=out_shape,
        in_specs=in_specs,
        out_specs=out_specs,
        compiler_params=compiler_params,
        cost_estimate=pl.CostEstimate(flops=flops, transcendentals=0,
                                      bytes_accessed=bytes_accessed),
        **grid_kwargs,
    )(*inputs)

    if with_feats:
        logits_p, feats_p = result
        return logits_p[:B, :n_class], feats_p[:B, :feat_in]
    return result[:B, :n_class]


def init_mlp_params(key, input_dims, n_hiddens, n_class):
    """Deterministic parameter init (same shapes as the PyTorch module)."""
    if isinstance(n_hiddens, int):
        n_hiddens = [n_hiddens]
    dims = [input_dims] + list(n_hiddens) + [n_class]
    params = []
    for i in range(len(dims) - 1):
        key, wk, bk = jax.random.split(key, 3)
        fan_in, fan_out = dims[i], dims[i + 1]
        bound = 1.0 / jnp.sqrt(jnp.float32(fan_in))
        w = jax.random.uniform(wk, (fan_out, fan_in), jnp.float32, -bound, bound)
        b = jax.random.uniform(bk, (fan_out,), jnp.float32, -bound, bound)
        params.append((w, b))
    return params


if __name__ == "__main__":
    key = jax.random.PRNGKey(0)
    kx, kp = jax.random.split(key)

    # NCHW input flattened to input_dims = 4*16*16 = 1024, like x.view(B, -1).
    B, C, H, W = 2, 4, 16, 16
    input_dims = C * H * W
    n_hiddens = [32, 16]
    n_class = 10

    x = jax.random.normal(kx, (B, C, H, W), jnp.float32)
    params = init_mlp_params(kp, input_dims, n_hiddens, n_class)

    # Plain-JAX reference.
    h_ref = x.reshape(B, -1)
    for (w, b) in params[:-1]:
        h_ref = jnp.maximum(h_ref @ w.T + b, 0.0)
    y_ref = h_ref @ params[-1][0].T + params[-1][1]

    # --- f32 compute path (strict correctness check), feats requested. ------
    prep_f32 = prepare_mlp_params(params, compute_dtype=jnp.float32)
    logits_f32, feats_f32 = mlp_forward(x, prep_f32, only_logits=False)
    jax.block_until_ready((logits_f32, feats_f32))
    assert logits_f32.shape == (B, n_class)
    assert feats_f32.shape == (B, n_hiddens[-1])
    assert jnp.allclose(logits_f32, y_ref, atol=1e-4, rtol=1e-4)
    assert jnp.allclose(feats_f32, h_ref, atol=1e-4, rtol=1e-4)

    # --- default bf16 path, only_logits=True (no feats buffer / writeback). --
    prep_bf16 = prepare_mlp_params(params)              # bf16 default
    logits_bf16 = mlp_forward(x, prep_bf16, only_logits=True)
    jax.block_until_ready(logits_bf16)
    assert logits_bf16.shape == (B, n_class)
    assert jnp.allclose(logits_bf16, y_ref, atol=5e-2, rtol=5e-2)

    # --- batch-tiled "parallel" grid path (engages v7x's 2nd TC). -----------
    B2 = 512
    x2 = jax.random.normal(jax.random.PRNGKey(1), (B2, C, H, W), jnp.float32)
    h2 = x2.reshape(B2, -1)
    for (w, b) in params[:-1]:
        h2 = jnp.maximum(h2 @ w.T + b, 0.0)
    y2_ref = h2 @ params[-1][0].T + params[-1][1]
    logits2 = mlp_forward(x2, prep_f32, only_logits=True, batch_tile=256)
    jax.block_until_ready(logits2)
    assert logits2.shape == (B2, n_class)
    assert jnp.allclose(logits2, y2_ref, atol=1e-3, rtol=1e-3)

    print("KERNEL_OK")
</pallas_src>

<mosaic_0001>
module attributes {stable_mosaic.version = 11 : i64} {
  func.func @_fused_mlp_kernel(%arg0: memref<8x1024xf32, #tpu.memory_space<vmem>>, %arg1: memref<1024x128xf32, #tpu.memory_space<vmem>>, %arg2: memref<1x128xf32, #tpu.memory_space<vmem>>, %arg3: memref<128x128xf32, #tpu.memory_space<vmem>>, %arg4: memref<1x128xf32, #tpu.memory_space<vmem>>, %arg5: memref<128x128xf32, #tpu.memory_space<vmem>>, %arg6: memref<1x128xf32, #tpu.memory_space<vmem>>, %arg7: memref<8x128xf32, #tpu.memory_space<vmem>>, %arg8: memref<8x128xf32, #tpu.memory_space<vmem>>) attributes {dimension_semantics = [], scalar_prefetch = 0 : i64, scratch_operands = 0 : i64, tpu.core_type = #tpu.core_type<tc>} {
    %c0 = arith.constant 0 : index
    %c0_0 = arith.constant 0 : index
    %0 = vector.load %arg0[%c0, %c0_0] : memref<8x1024xf32, #tpu.memory_space<vmem>>, vector<8x1024xf32>
    %c0_1 = arith.constant 0 : index
    %c0_2 = arith.constant 0 : index
    %1 = vector.load %arg1[%c0_1, %c0_2] : memref<1024x128xf32, #tpu.memory_space<vmem>>, vector<1024x128xf32>
    %c0_3 = arith.constant 0 : index
    %c0_4 = arith.constant 0 : index
    %2 = vector.load %arg2[%c0_3, %c0_4] : memref<1x128xf32, #tpu.memory_space<vmem>>, vector<1x128xf32>
    %cst = arith.constant dense<0.000000e+00> : vector<8x128xf32>
    %3 = tpu.matmul %0, %1, %cst {dimension_numbers = #tpu.dot_dimension_numbers<[1], [0], [0], [1], [0, 0, 1, 1], [], []>} : vector<8x1024xf32>, vector<1024x128xf32>, vector<8x128xf32> -> vector<8x128xf32>
    %4 = vector.broadcast %2 : vector<1x128xf32> to vector<8x128xf32>
    %5 = arith.addf %3, %4 : vector<8x128xf32>
    %cst_5 = arith.constant 0.000000e+00 : f32
    %6 = vector.broadcast %cst_5 : f32 to vector<8x128xf32>
    %7 = arith.maximumf %5, %6 : vector<8x128xf32>
    %c0_6 = arith.constant 0 : index
    %c0_7 = arith.constant 0 : index
    %8 = vector.load %arg3[%c0_6, %c0_7] : memref<128x128xf32, #tpu.memory_space<vmem>>, vector<128x128xf32>
    %c0_8 = arith.constant 0 : index
    %c0_9 = arith.constant 0 : index
    %9 = vector.load %arg4[%c0_8, %c0_9] : memref<1x128xf32, #tpu.memory_space<vmem>>, vector<1x128xf32>
    %cst_10 = arith.constant dense<0.000000e+00> : vector<8x128xf32>
    %10 = tpu.matmul %7, %8, %cst_10 {dimension_numbers = #tpu.dot_dimension_numbers<[1], [0], [0], [1], [0, 0, 1, 1], [], []>} : vector<8x128xf32>, vector<128x128xf32>, vector<8x128xf32> -> vector<8x128xf32>
    %11 = vector.broadcast %9 : vector<1x128xf32> to vector<8x128xf32>
    %12 = arith.addf %10, %11 : vector<8x128xf32>
    %cst_11 = arith.constant 0.000000e+00 : f32
    %13 = vector.broadcast %cst_11 : f32 to vector<8x128xf32>
    %14 = arith.maximumf %12, %13 : vector<8x128xf32>
    %c0_12 = arith.constant 0 : index
    %c0_13 = arith.constant 0 : index
    %15 = vector.load %arg8[%c0_12, %c0_13] : memref<8x128xf32, #tpu.memory_space<vmem>>, vector<8x128xf32>
    tpu.vector_store %arg8[%c0_12, %c0_13], %14 {strides = array<i32>} : memref<8x128xf32, #tpu.memory_space<vmem>>, vector<8x128xf32>,
    %c0_14 = arith.constant 0 : index
    %c0_15 = arith.constant 0 : index
    %16 = vector.load %arg5[%c0_14, %c0_15] : memref<128x128xf32, #tpu.memory_space<vmem>>, vector<128x128xf32>
    %c0_16 = arith.constant 0 : index
    %c0_17 = arith.constant 0 : index
    %17 = vector.load %arg6[%c0_16, %c0_17] : memref<1x128xf32, #tpu.memory_space<vmem>>, vector<1x128xf32>
    %cst_18 = arith.constant dense<0.000000e+00> : vector<8x128xf32>
    %18 = tpu.matmul %14, %16, %cst_18 {dimension_numbers = #tpu.dot_dimension_numbers<[1], [0], [0], [1], [0, 0, 1, 1], [], []>} : vector<8x128xf32>, vector<128x128xf32>, vector<8x128xf32> -> vector<8x128xf32>
    %19 = vector.broadcast %17 : vector<1x128xf32> to vector<8x128xf32>
    %20 = arith.addf %18, %19 : vector<8x128xf32>
    %c0_19 = arith.constant 0 : index
    %c0_20 = arith.constant 0 : index
    %21 = vector.load %arg7[%c0_19, %c0_20] : memref<8x128xf32, #tpu.memory_space<vmem>>, vector<8x128xf32>
    tpu.vector_store %arg7[%c0_19, %c0_20], %20 {strides = array<i32>} : memref<8x128xf32, #tpu.memory_space<vmem>>, vector<8x128xf32>,
    return
  }
}

</mosaic_0001>

<llo_original>
// kernel: tpu_custom_call.1
$region0: #{tpu_custom_call.1}
  #allocation0 [shape = 'u32[]', space=smem, size = 0x4, offset = 0x4, fixed_abs, tag = 'smem constant byte address 0x4 - core index']
  #allocation1 [shape = 'u32[72,128]{1,0:T(1,128)}', space=vmem, size = 0x9000, scoped, tag = 'internal scratch']
  %s0 = inlined_call_operand.hbm [shape: f32[8,1024], index: 0, kind: input, shape index: {}]
  %s1 = inlined_call_operand.hbm [shape: f32[1024,128], index: 1, kind: input, shape index: {}]
  %s2 = inlined_call_operand.vmem [shape: f32[1,128], index: 2, kind: input, shape index: {}]
  %s3 = inlined_call_operand.hbm [shape: f32[128,128], index: 3, kind: input, shape index: {}]
  %s4 = inlined_call_operand.vmem [shape: f32[1,128], index: 4, kind: input, shape index: {}]
  %s5 = inlined_call_operand.hbm [shape: f32[128,128], index: 5, kind: input, shape index: {}]
  %s6 = inlined_call_operand.vmem [shape: f32[1,128], index: 6, kind: input, shape index: {}]
  %s7 = inlined_call_operand.hbm [shape: f32[8,128], index: 7, kind: output, shape index: {0}]
  %s8 = inlined_call_operand.hbm [shape: f32[8,128], index: 8, kind: output, shape index: {1}]
  %9 = xla_tuple %s7, %s8
  %s10 = sld [smem:[#allocation0]]
  $region62: #{tpu_custom_call.1} parent=0
    _
  %s12 = ssub.s32 1, %s10
  %s13 = scalar_select 0, %s12, %s10
  $region1: #{tpu_custom_call.1} parent=0
    #allocation2 [shape = 'u8[32768]{0}', space=vmem, size = 0x8000, scoped, tag = 'input window, operand 0, single buffered']
    #allocation3 [shape = 's32[1]{0}', space=sflag, size = 0x4, scoped, tag = 'scoped memory for tpu_custom_call.1']
    #allocation4 [shape = 's32[1]{0}', space=sflag, size = 0x4, scoped, tag = 'scoped memory for tpu_custom_call.1']
    #allocation5 [shape = 'u8[524288]{0}', space=vmem, size = 0x80000, scoped, tag = 'input window, operand 1, single buffered']
    #allocation6 [shape = 's32[1]{0}', space=sflag, size = 0x4, scoped, tag = 'scoped memory for tpu_custom_call.1']
    #allocation7 [shape = 'u8[65536]{0}', space=vmem, size = 0x10000, scoped, tag = 'input window, operand 3, single buffered']
    #allocation8 [shape = 'u8[65536]{0}', space=vmem, size = 0x10000, scoped, tag = 'input window, operand 5, single buffered']
    #allocation9 [shape = 's32[1]{0}', space=sflag, size = 0x4, scoped, tag = 'scoped memory for tpu_custom_call.1']
    #allocation10 [shape = 'u8[4096]{0}', space=vmem, size = 0x1000, scoped, tag = 'output window, operand 0, single buffered']
    #allocation11 [shape = 'u8[4096]{0}', space=vmem, size = 0x1000, scoped, tag = 'output window, operand 1, single buffered']
    #allocation12 [shape = 's32[1]{0}', space=sflag, size = 0x4, scoped, tag = 'scoped memory for tpu_custom_call.1']
    %14 = vsyncpa [#allocation3], 0
    %15 = vsyncpa [#allocation6], 0
    %16 = vsyncpa [#allocation9], 0
    %17 = vsyncpa [#allocation4], 0
    %18 = vsyncpa [#allocation12], 0
    // Predicated region
    $region2: #{tpu_custom_call.1} parent=1 // pred_check
      _
    $region3: #{tpu_custom_call.1} parent=1 // pred_check_branch
      %20 = sbr.rel (0) target = $region5
    $region4: #{tpu_custom_call.1} parent=1 // pred_region
      %22 = vsyncadd [#allocation3], 0
      %s24 = sshll.u32 %s0, 4
      %s25 = int_to_ptr.hbm [resolvable:$true] %s24
      %s26 = sshll.u32 [#allocation2], 4
      %s27 = int_to_ptr.vmem [resolvable:$true] %s26
      %29 = dma.hbm_to_vmem [thread:$0]  %s25, 1024, %s27, [#allocation3]
    $region5: #{tpu_custom_call.1} parent=1 // pred_fallthru
      _
    // Predicated region
    $region6: #{tpu_custom_call.1} parent=1 // pred_check
      _
    $region7: #{tpu_custom_call.1} parent=1 // pred_check_branch
      %31 = sbr.rel (0) target = $region9
    $region8: #{tpu_custom_call.1} parent=1 // pred_region
      %33 = vsyncadd [#allocation6], 0
      %s34 = sshll.u32 %s1, 4
      %s35 = int_to_ptr.hbm [resolvable:$true] %s34
      %s36 = sshll.u32 [#allocation5], 4
      %s37 = int_to_ptr.vmem [resolvable:$true] %s36
      %42 = dma.hbm_to_vmem [thread:$0]  %s35, 16384, %s37, [#allocation6], 128, 128, 8
    $region9: #{tpu_custom_call.1} parent=1 // pred_fallthru
      _
    // Predicated region
    $region10: #{tpu_custom_call.1} parent=1 // pred_check
      _
    $region11: #{tpu_custom_call.1} parent=1 // pred_check_branch
      %44 = sbr.rel (0) target = $region13
    $region12: #{tpu_custom_call.1} parent=1 // pred_region
      _
    $region13: #{tpu_custom_call.1} parent=1 // pred_fallthru
      _
    // Predicated region
    $region14: #{tpu_custom_call.1} parent=1 // pred_check
      _
    $region15: #{tpu_custom_call.1} parent=1 // pred_check_branch
      %46 = sbr.rel (0) target = $region17
    $region16: #{tpu_custom_call.1} parent=1 // pred_region
      %48 = vsyncadd [#allocation6], 0
      %s49 = sshll.u32 %s3, 4
      %s50 = int_to_ptr.hbm [resolvable:$true] %s49
      %s51 = sshll.u32 [#allocation7], 4
      %s52 = int_to_ptr.vmem [resolvable:$true] %s51
      %57 = dma.hbm_to_vmem [thread:$0]  %s50, 2048, %s52, [#allocation6], 128, 128, 8
    $region17: #{tpu_custom_call.1} parent=1 // pred_fallthru
      _
    // Predicated region
    $region18: #{tpu_custom_call.1} parent=1 // pred_check
      _
    $region19: #{tpu_custom_call.1} parent=1 // pred_check_branch
      %59 = sbr.rel (0) target = $region21
    $region20: #{tpu_custom_call.1} parent=1 // pred_region
      _
    $region21: #{tpu_custom_call.1} parent=1 // pred_fallthru
      _
    // Predicated region
    $region22: #{tpu_custom_call.1} parent=1 // pred_check
      _
    $region23: #{tpu_custom_call.1} parent=1 // pred_check_branch
      %61 = sbr.rel (0) target = $region25
    $region24: #{tpu_custom_call.1} parent=1 // pred_region
      %63 = vsyncadd [#allocation9], 0
      %s64 = sshll.u32 %s5, 4
      %s65 = int_to_ptr.hbm [resolvable:$true] %s64
      %s66 = sshll.u32 [#allocation8], 4
      %s67 = int_to_ptr.vmem [resolvable:$true] %s66
      %72 = dma.hbm_to_vmem [thread:$0]  %s65, 2048, %s67, [#allocation9], 128, 128, 8
    $region25: #{tpu_custom_call.1} parent=1 // pred_fallthru
      _
    // Predicated region
    $region26: #{tpu_custom_call.1} parent=1 // pred_check
      _
    $region27: #{tpu_custom_call.1} parent=1 // pred_check_branch
      %74 = sbr.rel (0) target = $region29
    $region28: #{tpu_custom_call.1} parent=1 // pred_region
      _
    $region29: #{tpu_custom_call.1} parent=1 // pred_fallthru
      _
    // Predicated region
    $region30: #{tpu_custom_call.1} parent=1 // pred_check
      _
    $region31: #{tpu_custom_call.1} parent=1 // pred_check_branch
      %76 = sbr.rel (0) target = $region33
    $region32: #{tpu_custom_call.1} parent=1 // pred_region
      %78 = dma.done [#allocation3], 1024
    $region33: #{tpu_custom_call.1} parent=1 // pred_fallthru
      _
    // Predicated region
    $region34: #{tpu_custom_call.1} parent=1 // pred_check
      _
    $region35: #{tpu_custom_call.1} parent=1 // pred_check_branch
      %80 = sbr.rel (0) target = $region37
    $region36: #{tpu_custom_call.1} parent=1 // pred_region
      %82 = dma.done [#allocation6], 16384
    $region37: #{tpu_custom_call.1} parent=1 // pred_fallthru
      _
    // Predicated region
    $region38: #{tpu_custom_call.1} parent=1 // pred_check
      _
    $region39: #{tpu_custom_call.1} parent=1 // pred_check_branch
      %84 = sbr.rel (0) target = $region41
    $region40: #{tpu_custom_call.1} parent=1 // pred_region
      %86 = dma.done [#allocation6], 2048
    $region41: #{tpu_custom_call.1} parent=1 // pred_fallthru
      _
    // Predicated region
    $region42: #{tpu_custom_call.1} parent=1 // pred_check
      _
    $region43: #{tpu_custom_call.1} parent=1 // pred_check_branch
      %88 = sbr.rel (0) target = $region45
    $region44: #{tpu_custom_call.1} parent=1 // pred_region
      %90 = dma.done [#allocation9], 2048
    $region45: #{tpu_custom_call.1} parent=1 // pred_fallthru
      _
    %v91 = vld [vmem:[#allocation2] sm:$0xff]
    %v92 = vld [vmem:[#allocation2 + $0x8] sm:$0xff]
    %v93 = vld [vmem:[#allocation2 + $0x10] sm:$0xff]
    %v94 = vld [vmem:[#allocation2 + $0x18] sm:$0xff]
    %v95 = vld [vmem:[#allocation2 + $0x20] sm:$0xff]
    %v96 = vld [vmem:[#allocation2 + $0x28] sm:$0xff]
    %v97 = vld [vmem:[#allocation2 + $0x30] sm:$0xff]
    %v98 = vld [vmem:[#allocation2 + $0x38] sm:$0xff]
    %v99 = vld [vmem:[#allocation5] sm:$0xff]
    %v100 = vld [vmem:[#allocation5 + $0x8] sm:$0xff]
    %v101 = vld [vmem:[#allocation5 + $0x10] sm:$0xff]
    %v102 = vld [vmem:[#allocation5 + $0x18] sm:$0xff]
    %v103 = vld [vmem:[#allocation5 + $0x20] sm:$0xff]
    %v104 = vld [vmem:[#allocation5 + $0x28] sm:$0xff]
    %v105 = vld [vmem:[#allocation5 + $0x30] sm:$0xff]
    %v106 = vld [vmem:[#allocation5 + $0x38] sm:$0xff]
    %v107 = vld [vmem:[#allocation5 + $0x40] sm:$0xff]
    %v108 = vld [vmem:[#allocation5 + $0x48] sm:$0xff]
    %v109 = vld [vmem:[#allocation5 + $0x50] sm:$0xff]
    %v110 = vld [vmem:[#allocation5 + $0x58] sm:$0xff]
    %v111 = vld [vmem:[#allocation5 + $0x60] sm:$0xff]
    %v112 = vld [vmem:[#allocation5 + $0x68] sm:$0xff]
    %v113 = vld [vmem:[#allocation5 + $0x70] sm:$0xff]
    %v114 = vld [vmem:[#allocation5 + $0x78] sm:$0xff]
    %v115 = vld [vmem:[#allocation5 + $0x80] sm:$0xff]
    %v116 = vld [vmem:[#allocation5 + $0x88] sm:$0xff]
    %v117 = vld [vmem:[#allocation5 + $0x90] sm:$0xff]
    %v118 = vld [vmem:[#allocation5 + $0x98] sm:$0xff]
    %v119 = vld [vmem:[#allocation5 + $0xa0] sm:$0xff]
    %v120 = vld [vmem:[#allocation5 + $0xa8] sm:$0xff]
    %v121 = vld [vmem:[#allocation5 + $0xb0] sm:$0xff]
    %v122 = vld [vmem:[#allocation5 + $0xb8] sm:$0xff]
    %v123 = vld [vmem:[#allocation5 + $0xc0] sm:$0xff]
    %v124 = vld [vmem:[#allocation5 + $0xc8] sm:$0xff]
    %v125 = vld [vmem:[#allocation5 + $0xd0] sm:$0xff]
    %v126 = vld [vmem:[#allocation5 + $0xd8] sm:$0xff]
    %v127 = vld [vmem:[#allocation5 + $0xe0] sm:$0xff]
    %v128 = vld [vmem:[#allocation5 + $0xe8] sm:$0xff]
    %v129 = vld [vmem:[#allocation5 + $0xf0] sm:$0xff]
    %v130 = vld [vmem:[#allocation5 + $0xf8] sm:$0xff]
    %v131 = vld [vmem:[#allocation5 + $0x100] sm:$0xff]
    %v132 = vld [vmem:[#allocation5 + $0x108] sm:$0xff]
    %v133 = vld [vmem:[#allocation5 + $0x110] sm:$0xff]
    %v134 = vld [vmem:[#allocation5 + $0x118] sm:$0xff]
    %v135 = vld [vmem:[#allocation5 + $0x120] sm:$0xff]
    %v136 = vld [vmem:[#allocation5 + $0x128] sm:$0xff]
    %v137 = vld [vmem:[#allocation5 + $0x130] sm:$0xff]
    %v138 = vld [vmem:[#allocation5 + $0x138] sm:$0xff]
    %v139 = vld [vmem:[#allocation5 + $0x140] sm:$0xff]
    %v140 = vld [vmem:[#allocation5 + $0x148] sm:$0xff]
    %v141 = vld [vmem:[#allocation5 + $0x150] sm:$0xff]
    %v142 = vld [vmem:[#allocation5 + $0x158] sm:$0xff]
    %v143 = vld [vmem:[#allocation5 + $0x160] sm:$0xff]
    %v144 = vld [vmem:[#allocation5 + $0x168] sm:$0xff]
    %v145 = vld [vmem:[#allocation5 + $0x170] sm:$0xff]
    %v146 = vld [vmem:[#allocation5 + $0x178] sm:$0xff]
    %v147 = vld [vmem:[#allocation5 + $0x180] sm:$0xff]
    %v148 = vld [vmem:[#allocation5 + $0x188] sm:$0xff]
    %v149 = vld [vmem:[#allocation5 + $0x190] sm:$0xff]
    %v150 = vld [vmem:[#allocation5 + $0x198] sm:$0xff]
    %v151 = vld [vmem:[#allocation5 + $0x1a0] sm:$0xff]
    %v152 = vld [vmem:[#allocation5 + $0x1a8] sm:$0xff]
    %v153 = vld [vmem:[#allocation5 + $0x1b0] sm:$0xff]
    %v154 = vld [vmem:[#allocation5 + $0x1b8] sm:$0xff]
    %v155 = vld [vmem:[#allocation5 + $0x1c0] sm:$0xff]
    %v156 = vld [vmem:[#allocation5 + $0x1c8] sm:$0xff]
    %v157 = vld [vmem:[#allocation5 + $0x1d0] sm:$0xff]
    %v158 = vld [vmem:[#allocation5 + $0x1d8] sm:$0xff]
    %v159 = vld [vmem:[#allocation5 + $0x1e0] sm:$0xff]
    %v160 = vld [vmem:[#allocation5 + $0x1e8] sm:$0xff]
    %v161 = vld [vmem:[#allocation5 + $0x1f0] sm:$0xff]
    %v162 = vld [vmem:[#allocation5 + $0x1f8] sm:$0xff]
    %v163 = vld [vmem:[#allocation5 + $0x200] sm:$0xff]
    %v164 = vld [vmem:[#allocation5 + $0x208] sm:$0xff]
    %v165 = vld [vmem:[#allocation5 + $0x210] sm:$0xff]
    %v166 = vld [vmem:[#allocation5 + $0x218] sm:$0xff]
    %v167 = vld [vmem:[#allocation5 + $0x220] sm:$0xff]
    %v168 = vld [vmem:[#allocation5 + $0x228] sm:$0xff]
    %v169 = vld [vmem:[#allocation5 + $0x230] sm:$0xff]
    %v170 = vld [vmem:[#allocation5 + $0x238] sm:$0xff]
    %v171 = vld [vmem:[#allocation5 + $0x240] sm:$0xff]
    %v172 = vld [vmem:[#allocation5 + $0x248] sm:$0xff]
    %v173 = vld [vmem:[#allocation5 + $0x250] sm:$0xff]
    %v174 = vld [vmem:[#allocation5 + $0x258] sm:$0xff]
    %v175 = vld [vmem:[#allocation5 + $0x260] sm:$0xff]
    %v176 = vld [vmem:[#allocation5 + $0x268] sm:$0xff]
    %v177 = vld [vmem:[#allocation5 + $0x270] sm:$0xff]
    %v178 = vld [vmem:[#allocation5 + $0x278] sm:$0xff]
    %v179 = vld [vmem:[#allocation5 + $0x280] sm:$0xff]
    %v180 = vld [vmem:[#allocation5 + $0x288] sm:$0xff]
    %v181 = vld [vmem:[#allocation5 + $0x290] sm:$0xff]
    %v182 = vld [vmem:[#allocation5 + $0x298] sm:$0xff]
    %v183 = vld [vmem:[#allocation5 + $0x2a0] sm:$0xff]
    %v184 = vld [vmem:[#allocation5 + $0x2a8] sm:$0xff]
    %v185 = vld [vmem:[#allocation5 + $0x2b0] sm:$0xff]
    %v186 = vld [vmem:[#allocation5 + $0x2b8] sm:$0xff]
    %v187 = vld [vmem:[#allocation5 + $0x2c0] sm:$0xff]
    %v188 = vld [vmem:[#allocation5 + $0x2c8] sm:$0xff]
    %v189 = vld [vmem:[#allocation5 + $0x2d0] sm:$0xff]
    %v190 = vld [vmem:[#allocation5 + $0x2d8] sm:$0xff]
    %v191 = vld [vmem:[#allocation5 + $0x2e0] sm:$0xff]
    %v192 = vld [vmem:[#allocation5 + $0x2e8] sm:$0xff]
    %v193 = vld [vmem:[#allocation5 + $0x2f0] sm:$0xff]
    %v194 = vld [vmem:[#allocation5 + $0x2f8] sm:$0xff]
    %v195 = vld [vmem:[#allocation5 + $0x300] sm:$0xff]
    %v196 = vld [vmem:[#allocation5 + $0x308] sm:$0xff]
    %v197 = vld [vmem:[#allocation5 + $0x310] sm:$0xff]
    %v198 = vld [vmem:[#allocation5 + $0x318] sm:$0xff]
    %v199 = vld [vmem:[#allocation5 + $0x320] sm:$0xff]
    %v200 = vld [vmem:[#allocation5 + $0x328] sm:$0xff]
    %v201 = vld [vmem:[#allocation5 + $0x330] sm:$0xff]
    %v202 = vld [vmem:[#allocation5 + $0x338] sm:$0xff]
    %v203 = vld [vmem:[#allocation5 + $0x340] sm:$0xff]
    %v204 = vld [vmem:[#allocation5 + $0x348] sm:$0xff]
    %v205 = vld [vmem:[#allocation5 + $0x350] sm:$0xff]
    %v206 = vld [vmem:[#allocation5 + $0x358] sm:$0xff]
    %v207 = vld [vmem:[#allocation5 + $0x360] sm:$0xff]
    %v208 = vld [vmem:[#allocation5 + $0x368] sm:$0xff]
    %v209 = vld [vmem:[#allocation5 + $0x370] sm:$0xff]
    %v210 = vld [vmem:[#allocation5 + $0x378] sm:$0xff]
    %v211 = vld [vmem:[#allocation5 + $0x380] sm:$0xff]
    %v212 = vld [vmem:[#allocation5 + $0x388] sm:$0xff]
    %v213 = vld [vmem:[#allocation5 + $0x390] sm:$0xff]
    %v214 = vld [vmem:[#allocation5 + $0x398] sm:$0xff]
    %v215 = vld [vmem:[#allocation5 + $0x3a0] sm:$0xff]
    %v216 = vld [vmem:[#allocation5 + $0x3a8] sm:$0xff]
    %v217 = vld [vmem:[#allocation5 + $0x3b0] sm:$0xff]
    %v218 = vld [vmem:[#allocation5 + $0x3b8] sm:$0xff]
    %v219 = vld [vmem:[#allocation5 + $0x3c0] sm:$0xff]
    %v220 = vld [vmem:[#allocation5 + $0x3c8] sm:$0xff]
    %v221 = vld [vmem:[#allocation5 + $0x3d0] sm:$0xff]
    %v222 = vld [vmem:[#allocation5 + $0x3d8] sm:$0xff]
    %v223 = vld [vmem:[#allocation5 + $0x3e0] sm:$0xff]
    %v224 = vld [vmem:[#allocation5 + $0x3e8] sm:$0xff]
    %v225 = vld [vmem:[#allocation5 + $0x3f0] sm:$0xff]
    %v226 = vld [vmem:[#allocation5 + $0x3f8] sm:$0xff]
    %v227 = vld [vmem:[%s2] sm:$0x1]
    %v229 = vperm.slane %v227, 0
    %231 = vmatpush.msra.mxu0 %v114
    %232 = vmatpush.msra.mxu0 %v113
    %233 = vmatpush.msra.mxu0 %v112
    %234 = vmatpush.msra.mxu0 %v111
    %235 = vmatpush.msra.mxu0 %v110
    %236 = vmatpush.msra.mxu0 %v109
    %237 = vmatpush.msra.mxu0 %v108
    %238 = vmatpush.msra.mxu0 %v107
    %239 = vmatpush.msra.mxu0 %v106
    %240 = vmatpush.msra.mxu0 %v105
    %241 = vmatpush.msra.mxu0 %v104
    %242 = vmatpush.msra.mxu0 %v103
    %243 = vmatpush.msra.mxu0 %v102
    %244 = vmatpush.msra.mxu0 %v101
    %245 = vmatpush.msra.mxu0 %v100
    %246 = vmatpush.msra.mxu0 %v99
    %247 = vmatmul.f32.gmra.mxu0 %v91
    %v248 = vpop.f32.mrf.mxu0
    %v249 = vadd.f32 %v229, %v248
    %250 = vdwg.mxu0
    %251 = vmatpush.msra.mxu0 %v130
    %252 = vmatpush.msra.mxu0 %v129
    %253 = vmatpush.msra.mxu0 %v128
    %254 = vmatpush.msra.mxu0 %v127
    %255 = vmatpush.msra.mxu0 %v126
    %256 = vmatpush.msra.mxu0 %v125
    %257 = vmatpush.msra.mxu0 %v124
    %258 = vmatpush.msra.mxu0 %v123
    %259 = vmatpush.msra.mxu0 %v122
    %260 = vmatpush.msra.mxu0 %v121
    %261 = vmatpush.msra.mxu0 %v120
    %262 = vmatpush.msra.mxu0 %v119
    %263 = vmatpush.msra.mxu0 %v118
    %264 = vmatpush.msra.mxu0 %v117
    %265 = vmatpush.msra.mxu0 %v116
    %266 = vmatpush.msra.mxu0 %v115
    %267 = vmatmul.f32.gmra.mxu0 %v92
    %v268 = vpop.f32.mrf.mxu0
    %v269 = vadd.f32 %v249, %v268
    %270 = vdwg.mxu0
    %271 = vmatpush.msra.mxu0 %v146
    %272 = vmatpush.msra.mxu0 %v145
    %273 = vmatpush.msra.mxu0 %v144
    %274 = vmatpush.msra.mxu0 %v143
    %275 = vmatpush.msra.mxu0 %v142
    %276 = vmatpush.msra.mxu0 %v141
    %277 = vmatpush.msra.mxu0 %v140
    %278 = vmatpush.msra.mxu0 %v139
    %279 = vmatpush.msra.mxu0 %v138
    %280 = vmatpush.msra.mxu0 %v137
    %281 = vmatpush.msra.mxu0 %v136
    %282 = vmatpush.msra.mxu0 %v135
    %283 = vmatpush.msra.mxu0 %v134
    %284 = vmatpush.msra.mxu0 %v133
    %285 = vmatpush.msra.mxu0 %v132
    %286 = vmatpush.msra.mxu0 %v131
    %287 = vmatmul.f32.gmra.mxu0 %v93
    %v288 = vpop.f32.mrf.mxu0
    %v289 = vadd.f32 %v269, %v288
    %290 = vdwg.mxu0
    %291 = vmatpush.msra.mxu0 %v162
    %292 = vmatpush.msra.mxu0 %v161
    %293 = vmatpush.msra.mxu0 %v160
    %294 = vmatpush.msra.mxu0 %v159
    %295 = vmatpush.msra.mxu0 %v158
    %296 = vmatpush.msra.mxu0 %v157
    %297 = vmatpush.msra.mxu0 %v156
    %298 = vmatpush.msra.mxu0 %v155
    %299 = vmatpush.msra.mxu0 %v154
    %300 = vmatpush.msra.mxu0 %v153
    %301 = vmatpush.msra.mxu0 %v152
    %302 = vmatpush.msra.mxu0 %v151
    %303 = vmatpush.msra.mxu0 %v150
    %304 = vmatpush.msra.mxu0 %v149
    %305 = vmatpush.msra.mxu0 %v148
    %306 = vmatpush.msra.mxu0 %v147
    %307 = vmatmul.f32.gmra.mxu0 %v94
    %v308 = vpop.f32.mrf.mxu0
    %v309 = vadd.f32 %v289, %v308
    %310 = vdwg.mxu0
    %311 = vmatpush.msra.mxu0 %v178
    %312 = vmatpush.msra.mxu0 %v177
    %313 = vmatpush.msra.mxu0 %v176
    %314 = vmatpush.msra.mxu0 %v175
    %315 = vmatpush.msra.mxu0 %v174
    %316 = vmatpush.msra.mxu0 %v173
    %317 = vmatpush.msra.mxu0 %v172
    %318 = vmatpush.msra.mxu0 %v171
    %319 = vmatpush.msra.mxu0 %v170
    %320 = vmatpush.msra.mxu0 %v169
    %321 = vmatpush.msra.mxu0 %v168
    %322 = vmatpush.msra.mxu0 %v167
    %323 = vmatpush.msra.mxu0 %v166
    %324 = vmatpush.msra.mxu0 %v165
    %325 = vmatpush.msra.mxu0 %v164
    %326 = vmatpush.msra.mxu0 %v163
    %327 = vmatmul.f32.gmra.mxu0 %v95
    %v328 = vpop.f32.mrf.mxu0
    %v329 = vadd.f32 %v309, %v328
    %330 = vdwg.mxu0
    %331 = vmatpush.msra.mxu0 %v194
    %332 = vmatpush.msra.mxu0 %v193
    %333 = vmatpush.msra.mxu0 %v192
    %334 = vmatpush.msra.mxu0 %v191
    %335 = vmatpush.msra.mxu0 %v190
    %336 = vmatpush.msra.mxu0 %v189
    %337 = vmatpush.msra.mxu0 %v188
    %338 = vmatpush.msra.mxu0 %v187
    %339 = vmatpush.msra.mxu0 %v186
    %340 = vmatpush.msra.mxu0 %v185
    %341 = vmatpush.msra.mxu0 %v184
    %342 = vmatpush.msra.mxu0 %v183
    %343 = vmatpush.msra.mxu0 %v182
    %344 = vmatpush.msra.mxu0 %v181
    %345 = vmatpush.msra.mxu0 %v180
    %346 = vmatpush.msra.mxu0 %v179
    %347 = vmatmul.f32.gmra.mxu0 %v96
    %v348 = vpop.f32.mrf.mxu0
    %v349 = vadd.f32 %v329, %v348
    %350 = vdwg.mxu0
    %351 = vmatpush.msra.mxu0 %v210
    %352 = vmatpush.msra.mxu0 %v209
    %353 = vmatpush.msra.mxu0 %v208
    %354 = vmatpush.msra.mxu0 %v207
    %355 = vmatpush.msra.mxu0 %v206
    %356 = vmatpush.msra.mxu0 %v205
    %357 = vmatpush.msra.mxu0 %v204
    %358 = vmatpush.msra.mxu0 %v203
    %359 = vmatpush.msra.mxu0 %v202
    %360 = vmatpush.msra.mxu0 %v201
    %361 = vmatpush.msra.mxu0 %v200
    %362 = vmatpush.msra.mxu0 %v199
    %363 = vmatpush.msra.mxu0 %v198
    %364 = vmatpush.msra.mxu0 %v197
    %365 = vmatpush.msra.mxu0 %v196
    %366 = vmatpush.msra.mxu0 %v195
    %367 = vmatmul.f32.gmra.mxu0 %v97
    %v368 = vpop.f32.mrf.mxu0
    %v369 = vadd.f32 %v349, %v368
    %370 = vdwg.mxu0
    %371 = vmatpush.msra.mxu0 %v226
    %372 = vmatpush.msra.mxu0 %v225
    %373 = vmatpush.msra.mxu0 %v224
    %374 = vmatpush.msra.mxu0 %v223
    %375 = vmatpush.msra.mxu0 %v222
    %376 = vmatpush.msra.mxu0 %v221
    %377 = vmatpush.msra.mxu0 %v220
    %378 = vmatpush.msra.mxu0 %v219
    %379 = vmatpush.msra.mxu0 %v218
    %380 = vmatpush.msra.mxu0 %v217
    %381 = vmatpush.msra.mxu0 %v216
    %382 = vmatpush.msra.mxu0 %v215
    %383 = vmatpush.msra.mxu0 %v214
    %384 = vmatpush.msra.mxu0 %v213
    %385 = vmatpush.msra.mxu0 %v212
    %386 = vmatpush.msra.mxu0 %v211
    %387 = vmatmul.f32.gmra.mxu0 %v98
    %v388 = vpop.f32.mrf.mxu0
    %v389 = vadd.f32 %v369, %v388
    %390 = vdwg.mxu0
    %v391 = vmax.f32 %v389, 0.0
    %v392 = vld [vmem:[#allocation7] sm:$0xff]
    %v393 = vld [vmem:[#allocation7 + $0x8] sm:$0xff]
    %v394 = vld [vmem:[#allocation7 + $0x10] sm:$0xff]
    %v395 = vld [vmem:[#allocation7 + $0x18] sm:$0xff]
    %v396 = vld [vmem:[#allocation7 + $0x20] sm:$0xff]
    %v397 = vld [vmem:[#allocation7 + $0x28] sm:$0xff]
    %v398 = vld [vmem:[#allocation7 + $0x30] sm:$0xff]
    %v399 = vld [vmem:[#allocation7 + $0x38] sm:$0xff]
    %v400 = vld [vmem:[#allocation7 + $0x40] sm:$0xff]
    %v401 = vld [vmem:[#allocation7 + $0x48] sm:$0xff]
    %v402 = vld [vmem:[#allocation7 + $0x50] sm:$0xff]
    %v403 = vld [vmem:[#allocation7 + $0x58] sm:$0xff]
    %v404 = vld [vmem:[#allocation7 + $0x60] sm:$0xff]
    %v405 = vld [vmem:[#allocation7 + $0x68] sm:$0xff]
    %v406 = vld [vmem:[#allocation7 + $0x70] sm:$0xff]
    %v407 = vld [vmem:[#allocation7 + $0x78] sm:$0xff]
    %v408 = vld [vmem:[%s4] sm:$0x1]
    %v410 = vperm.slane %v408, 0
    %412 = vmatpush.msra.mxu0 %v407
    %413 = vmatpush.msra.mxu0 %v406
    %414 = vmatpush.msra.mxu0 %v405
    %415 = vmatpush.msra.mxu0 %v404
    %416 = vmatpush.msra.mxu0 %v403
    %417 = vmatpush.msra.mxu0 %v402
    %418 = vmatpush.msra.mxu0 %v401
    %419 = vmatpush.msra.mxu0 %v400
    %420 = vmatpush.msra.mxu0 %v399
    %421 = vmatpush.msra.mxu0 %v398
    %422 = vmatpush.msra.mxu0 %v397
    %423 = vmatpush.msra.mxu0 %v396
    %424 = vmatpush.msra.mxu0 %v395
    %425 = vmatpush.msra.mxu0 %v394
    %426 = vmatpush.msra.mxu0 %v393
    %427 = vmatpush.msra.mxu0 %v392
    %428 = vmatmul.f32.gmra.mxu0 %v391
    %v429 = vpop.f32.mrf.mxu0
    %v430 = vadd.f32 %v410, %v429
    %431 = vdwg.mxu0
    %v432 = vmax.f32 %v430, 0.0
    %433 = vst [vmem:[#allocation11] sm:$0xff] %v432
    %v434 = vld [vmem:[#allocation8] sm:$0xff]
    %v435 = vld [vmem:[#allocation8 + $0x8] sm:$0xff]
    %v436 = vld [vmem:[#allocation8 + $0x10] sm:$0xff]
    %v437 = vld [vmem:[#allocation8 + $0x18] sm:$0xff]
    %v438 = vld [vmem:[#allocation8 + $0x20] sm:$0xff]
    %v439 = vld [vmem:[#allocation8 + $0x28] sm:$0xff]
    %v440 = vld [vmem:[#allocation8 + $0x30] sm:$0xff]
    %v441 = vld [vmem:[#allocation8 + $0x38] sm:$0xff]
    %v442 = vld [vmem:[#allocation8 + $0x40] sm:$0xff]
    %v443 = vld [vmem:[#allocation8 + $0x48] sm:$0xff]
    %v444 = vld [vmem:[#allocation8 + $0x50] sm:$0xff]
    %v445 = vld [vmem:[#allocation8 + $0x58] sm:$0xff]
    %v446 = vld [vmem:[#allocation8 + $0x60] sm:$0xff]
    %v447 = vld [vmem:[#allocation8 + $0x68] sm:$0xff]
    %v448 = vld [vmem:[#allocation8 + $0x70] sm:$0xff]
    %v449 = vld [vmem:[#allocation8 + $0x78] sm:$0xff]
    %v450 = vld [vmem:[%s6] sm:$0x1]
    %v452 = vperm.slane %v450, 0
    %454 = vmatpush.msra.mxu0 %v449
    %455 = vmatpush.msra.mxu0 %v448
    %456 = vmatpush.msra.mxu0 %v447
    %457 = vmatpush.msra.mxu0 %v446
    %458 = vmatpush.msra.mxu0 %v445
    %459 = vmatpush.msra.mxu0 %v444
    %460 = vmatpush.msra.mxu0 %v443
    %461 = vmatpush.msra.mxu0 %v442
    %462 = vmatpush.msra.mxu0 %v441
    %463 = vmatpush.msra.mxu0 %v440
    %464 = vmatpush.msra.mxu0 %v439
    %465 = vmatpush.msra.mxu0 %v438
    %466 = vmatpush.msra.mxu0 %v437
    %467 = vmatpush.msra.mxu0 %v436
    %468 = vmatpush.msra.mxu0 %v435
    %469 = vmatpush.msra.mxu0 %v434
    %470 = vmatmul.f32.gmra.mxu0 %v432
    %v471 = vpop.f32.mrf.mxu0
    %v472 = vadd.f32 %v452, %v471
    %473 = vdwg.mxu0
    %474 = vst [vmem:[#allocation10] sm:$0xff] %v472
    // Predicated region
    $region46: #{tpu_custom_call.1} parent=1 // pred_check
      _
    $region47: #{tpu_custom_call.1} parent=1 // pred_check_branch
      %476 = sbr.rel (0) target = $region49
    $region48: #{tpu_custom_call.1} parent=1 // pred_region
      %478 = vsyncadd [#allocation4], 0
      %s480 = sshll.u32 [#allocation10], 4
      %s481 = int_to_ptr.vmem [resolvable:$true] %s480
      %s482 = sshll.u32 %s7, 4
      %s483 = int_to_ptr.hbm [resolvable:$true] %s482
      %485 = dma.vmem_to_hbm [thread:$0]  %s481, 128, %s483, [#allocation4]
    $region49: #{tpu_custom_call.1} parent=1 // pred_fallthru
      _
    // Predicated region
    $region50: #{tpu_custom_call.1} parent=1 // pred_check
      _
    $region51: #{tpu_custom_call.1} parent=1 // pred_check_branch
      %487 = sbr.rel (0) target = $region53
    $region52: #{tpu_custom_call.1} parent=1 // pred_region
      %489 = vsyncadd [#allocation12], 0
      %s491 = sshll.u32 [#allocation11], 4
      %s492 = int_to_ptr.vmem [resolvable:$true] %s491
      %s493 = sshll.u32 %s8, 4
      %s494 = int_to_ptr.hbm [resolvable:$true] %s493
      %496 = dma.vmem_to_hbm [thread:$0]  %s492, 128, %s494, [#allocation12]
    $region53: #{tpu_custom_call.1} parent=1 // pred_fallthru
      _
    // Predicated region
    $region54: #{tpu_custom_call.1} parent=1 // pred_check
      _
    $region55: #{tpu_custom_call.1} parent=1 // pred_check_branch
      %498 = sbr.rel (0) target = $region57
    $region56: #{tpu_custom_call.1} parent=1 // pred_region
      %500 = dma.done [#allocation4], 128
    $region57: #{tpu_custom_call.1} parent=1 // pred_fallthru
      _
    // Predicated region
    $region58: #{tpu_custom_call.1} parent=1 // pred_check
      _
    $region59: #{tpu_custom_call.1} parent=1 // pred_check_branch
      %502 = sbr.rel (0) target = $region61
    $region60: #{tpu_custom_call.1} parent=1 // pred_region
      %504 = dma.done [#allocation12], 128
    $region61: #{tpu_custom_call.1} parent=1 // pred_fallthru
      _
    %505 = vsyncpa [#allocation3], 1
    %506 = vsyncpa [#allocation6], 1
    %507 = vsyncpa [#allocation9], 1
    %508 = vsyncpa [#allocation4], 1
    %509 = vsyncpa [#allocation12], 1

</llo_original>
